<compile_context>
chip_gen: v7x
topology: tpu7x:2x2x1
jax: 0.10.0
libtpu: 0.0.40
codegen_flags: <defaults>
</compile_context>

<pallas_src>
import functools

import jax
import jax.numpy as jnp
from jax.experimental import pallas as pl
from jax.experimental.pallas import tpu as pltpu


def _center_loss_kernel(labels_ref,    # SMEM (Bp,) i32   (scalar prefetch)
                        x_ref,         # VMEM (tb, D) f32 (streamed batch tile)
                        centers_ref,   # VMEM (C, D) f32  (resident)
                        out_ref,       # VMEM (1, 1) f32  (accumulator output)
                        gathered_ref,  # VMEM (tb, D) f32 scratch
                        *, batch):
    tb, _ = x_ref.shape
    num_classes = centers_ref.shape[0]

    pid = pl.program_id(0)
    nsteps = pl.num_programs(0)
    tile_start = pid * tb

    @pl.when(pid == 0)
    def _init():
        out_ref[...] = jnp.zeros_like(out_ref)

    # Direct label-driven gather: centers[labels[row]] for each row of this tile.
    @pl.loop(0, tb)
    def _gather(i):
        lbl = labels_ref[tile_start + i]
        lbl = jnp.minimum(jnp.maximum(lbl, 0), num_classes - 1)  # guard OOB labels
        gathered_ref[pl.ds(i, 1), :] = centers_ref[pl.ds(lbl, 1), :]

    # Vectorized squared distance over the whole tile (VPU + XLU lane reduce).
    diff = x_ref[...] - gathered_ref[...]
    dist = jnp.sum(diff * diff, axis=1, keepdims=True)           # (tb, 1)
    dist = jnp.clip(dist, 1e-12, 1e12)

    # Mask rows that are batch padding.
    row_ids = tile_start + jax.lax.broadcasted_iota(jnp.int32, dist.shape, 0)
    dist = jnp.where(row_ids < batch, dist, 0.0)

    out_ref[...] += jnp.sum(dist, axis=0, keepdims=True)

    @pl.when(pid == nsteps - 1)
    def _finalize():
        out_ref[...] = out_ref[...] * (1.0 / batch)


def center_loss(x, labels, centers, *, block_rows=1024):
    """x: (B, D) f32, labels: (B,) int, centers: (C, D) f32 -> scalar f32 loss."""
    B, D = x.shape
    C = centers.shape[0]

    # Tile size: multiple of 8 sublanes, capped by block_rows. Default of 1024 rows
    # (x tile 2 MiB + scratch 2 MiB + double-buffering) fits comfortably inside the
    # ~32 MiB scoped VMEM of v7x as well as v5e/v6e.
    tb = max(8, min(block_rows, ((B + 7) // 8) * 8))
    tb = (tb // 8) * 8
    Bp = ((B + tb - 1) // tb) * tb

    labels = labels.astype(jnp.int32)
    if Bp != B:
        x = jnp.pad(x, ((0, Bp - B), (0, 0)))
        labels = jnp.pad(labels, (0, Bp - B))

    kernel = functools.partial(_center_loss_kernel, batch=B)

    cost = pl.CostEstimate(
        flops=3 * Bp * D,
        transcendentals=0,
        bytes_accessed=4 * (Bp * D + C * D + Bp + 1),
    )

    out = pl.pallas_call(
        kernel,
        out_shape=jax.ShapeDtypeStruct((1, 1), jnp.float32),
        grid_spec=pltpu.PrefetchScalarGridSpec(
            num_scalar_prefetch=1,
            grid=(Bp // tb,),
            in_specs=[
                pl.BlockSpec((tb, D), lambda i, lbl: (i, 0)),   # stream x tiles
                pl.BlockSpec((C, D), lambda i, lbl: (0, 0)),    # centers resident
            ],
            out_specs=pl.BlockSpec((1, 1), lambda i, lbl: (0, 0)),
            scratch_shapes=[pltpu.VMEM((tb, D), jnp.float32)],
        ),
        compiler_params=pltpu.CompilerParams(
            # The single grid axis carries the scalar accumulation -> "arbitrary".
            # (On v7x the batch could additionally be split across the 2 TCs with
            #  per-core partial sums; kept a single accumulator here.)
            dimension_semantics=("arbitrary",),
        ),
        cost_estimate=cost,
    )(labels, x, centers)
    return out[0, 0]


if __name__ == "__main__":
    num_classes = 10
    feat_dim = 512

    key = jax.random.PRNGKey(0)
    k_x, k_c, k_l, k_x2, k_l2 = jax.random.split(key, 5)

    def reference(x, labels, centers):
        d = jnp.sum((x - centers[labels]) ** 2, axis=1)
        return jnp.mean(jnp.clip(d, 1e-12, 1e12))

    centers = jax.random.normal(k_c, (num_classes, feat_dim), dtype=jnp.float32)

    # Case 1: module's batch_size (256) with 128-row tiles -> multi-step accumulation.
    b1 = 256
    x1 = jax.random.normal(k_x, (b1, feat_dim), dtype=jnp.float32)
    l1 = jax.random.randint(k_l, (b1,), 0, num_classes, dtype=jnp.int32)
    loss1 = center_loss(x1, l1, centers, block_rows=128)
    jax.block_until_ready(loss1)
    ref1 = reference(x1, l1, centers)
    assert jnp.allclose(loss1, ref1, rtol=1e-4, atol=1e-4), (loss1, ref1)

    # Case 2: batch not a multiple of the tile -> exercises padding + masking.
    b2 = 100
    x2 = jax.random.normal(k_x2, (b2, feat_dim), dtype=jnp.float32)
    l2 = jax.random.randint(k_l2, (b2,), 0, num_classes, dtype=jnp.int32)
    loss2 = center_loss(x2, l2, centers, block_rows=64)
    jax.block_until_ready(loss2)
    ref2 = reference(x2, l2, centers)
    assert jnp.allclose(loss2, ref2, rtol=1e-4, atol=1e-4), (loss2, ref2)

    print("KERNEL_OK")
</pallas_src>

<mosaic_0001>
module attributes {stable_mosaic.version = 11 : i64} {
  func.func @_center_loss_kernel(%arg0: i32, %arg1: memref<256xi32, #tpu.memory_space<smem>>, %arg2: memref<128x512xf32, #tpu.memory_space<vmem>>, %arg3: memref<10x512xf32, #tpu.memory_space<vmem>>, %arg4: memref<1x1xf32, #tpu.memory_space<vmem>>, %arg5: memref<128x512xf32, #tpu.memory_space<vmem>>) attributes {dimension_semantics = [#tpu.dimension_semantics<arbitrary>], iteration_bounds = array<i64: 2>, scalar_prefetch = 1 : i64, scratch_operands = 1 : i64, tpu.core_type = #tpu.core_type<tc>, window_params = [{transform_indices = @transform_0, window_bounds = array<i64: 128, 512>}, {pipeline_mode = #tpu.pipeline_mode<synchronous>, transform_indices = @transform_1, window_bounds = array<i64: 10, 512>}, {pipeline_mode = #tpu.pipeline_mode<synchronous>, transform_indices = @transform_2, window_bounds = array<i64: 1, 1>}]} {
    %c128_i32 = arith.constant 128 : i32
    %0 = arith.muli %arg0, %c128_i32 : i32
    %c0_i32 = arith.constant 0 : i32
    %1 = arith.cmpi eq, %arg0, %c0_i32 : i32
    %2 = arith.extui %1 : i1 to i32
    %c0_i32_0 = arith.constant 0 : i32
    %3 = arith.cmpi ne, %2, %c0_i32_0 : i32
    scf.if %3 {
      %cst_17 = arith.constant 0.000000e+00 : f32
      %30 = vector.broadcast %cst_17 : f32 to vector<1x1xf32>
      %c0_18 = arith.constant 0 : index
      %c0_19 = arith.constant 0 : index
      %31 = vector.load %arg4[%c0_18, %c0_19] : memref<1x1xf32, #tpu.memory_space<vmem>>, vector<1x1xf32>
      tpu.vector_store %arg4[%c0_18, %c0_19], %30 {strides = array<i32>} : memref<1x1xf32, #tpu.memory_space<vmem>>, vector<1x1xf32>,
    } else {
    }
    %c0_i32_1 = arith.constant 0 : i32
    %c128_i32_2 = arith.constant 128 : i32
    %4 = arith.addi %c0_i32_1, %c128_i32_2 : i32
    %c1_i32 = arith.constant 1 : i32
    scf.for %arg6 = %c0_i32_1 to %4 step %c1_i32  : i32 {
      %c1_i32_17 = arith.constant 1 : i32
      %30 = arith.muli %arg6, %c1_i32_17 : i32
      %c0_i32_18 = arith.constant 0 : i32
      %31 = arith.addi %c0_i32_18, %30 : i32
      %32 = arith.addi %0, %31 : i32
      %33 = arith.index_cast %32 : i32 to index
      %34 = memref.load %arg1[%33] : memref<256xi32, #tpu.memory_space<smem>>
      %c0_i32_19 = arith.constant 0 : i32
      %35 = arith.maxsi %34, %c0_i32_19 : i32
      %c9_i32 = arith.constant 9 : i32
      %36 = arith.minsi %35, %c9_i32 : i32
      %37 = arith.index_cast %36 : i32 to index
      %c0_20 = arith.constant 0 : index
      %38 = vector.load %arg3[%37, %c0_20] : memref<10x512xf32, #tpu.memory_space<vmem>>, vector<1x512xf32>
      %39 = arith.index_cast %31 : i32 to index
      %c0_21 = arith.constant 0 : index
      %40 = vector.load %arg5[%39, %c0_21] : memref<128x512xf32, #tpu.memory_space<vmem>>, vector<1x512xf32>
      tpu.vector_store %arg5[%39, %c0_21], %38 {strides = array<i32>} : memref<128x512xf32, #tpu.memory_space<vmem>>, vector<1x512xf32>,
    }
    %c128_i32_3 = arith.constant 128 : i32
    %c0 = arith.constant 0 : index
    %c0_4 = arith.constant 0 : index
    %5 = vector.load %arg2[%c0, %c0_4] : memref<128x512xf32, #tpu.memory_space<vmem>>, vector<128x512xf32>
    %c0_5 = arith.constant 0 : index
    %c0_6 = arith.constant 0 : index
    %6 = vector.load %arg5[%c0_5, %c0_6] : memref<128x512xf32, #tpu.memory_space<vmem>>, vector<128x512xf32>
    %7 = arith.subf %5, %6 : vector<128x512xf32>
    %8 = arith.mulf %7, %7 : vector<128x512xf32>
    %cst = arith.constant dense<0.000000e+00> : vector<128xf32>
    %9 = vector.multi_reduction <add>, %8, %cst [1] : vector<128x512xf32> to vector<128xf32>
    %10 = vector.shape_cast %9 : vector<128xf32> to vector<128x1xf32>
    %cst_7 = arith.constant 9.99999996E-13 : f32
    %cst_8 = arith.constant 9.99999995E+11 : f32
    %11 = vector.broadcast %cst_7 : f32 to vector<128x1xf32>
    %12 = arith.maximumf %11, %10 : vector<128x1xf32>
    %13 = vector.broadcast %cst_8 : f32 to vector<128x1xf32>
    %14 = arith.minimumf %13, %12 : vector<128x1xf32>
    %15 = tpu.iota {dimensions = array<i32: 0>} : vector<128x1xi32>
    %16 = vector.broadcast %0 : i32 to vector<128x1xi32>
    %17 = arith.addi %16, %15 : vector<128x1xi32>
    %c256_i32 = arith.constant 256 : i32
    %18 = vector.broadcast %c256_i32 : i32 to vector<128x1xi32>
    %19 = arith.cmpi slt, %17, %18 : vector<128x1xi32>
    %cst_9 = arith.constant 0.000000e+00 : f32
    %20 = vector.broadcast %cst_9 : f32 to vector<128x1xf32>
    %21 = arith.select %19, %14, %20 : vector<128x1xi1>, vector<128x1xf32>
    %c0_10 = arith.constant 0 : index
    %c0_11 = arith.constant 0 : index
    %22 = vector.load %arg4[%c0_10, %c0_11] : memref<1x1xf32, #tpu.memory_space<vmem>>, vector<1x1xf32>
    %cst_12 = arith.constant dense<0.000000e+00> : vector<1xf32>
    %23 = vector.multi_reduction <add>, %21, %cst_12 [0] : vector<128x1xf32> to vector<1xf32>
    %24 = vector.shape_cast %23 : vector<1xf32> to vector<1x1xf32>
    %25 = arith.addf %22, %24 : vector<1x1xf32>
    %c0_13 = arith.constant 0 : index
    %c0_14 = arith.constant 0 : index
    %26 = vector.load %arg4[%c0_13, %c0_14] : memref<1x1xf32, #tpu.memory_space<vmem>>, vector<1x1xf32>
    tpu.vector_store %arg4[%c0_13, %c0_14], %25 {strides = array<i32>} : memref<1x1xf32, #tpu.memory_space<vmem>>, vector<1x1xf32>,
    %c1_i32_15 = arith.constant 1 : i32
    %27 = arith.cmpi eq, %arg0, %c1_i32_15 : i32
    %28 = arith.extui %27 : i1 to i32
    %c0_i32_16 = arith.constant 0 : i32
    %29 = arith.cmpi ne, %28, %c0_i32_16 : i32
    scf.if %29 {
      %c0_17 = arith.constant 0 : index
      %c0_18 = arith.constant 0 : index
      %30 = vector.load %arg4[%c0_17, %c0_18] : memref<1x1xf32, #tpu.memory_space<vmem>>, vector<1x1xf32>
      %cst_19 = arith.constant 3.906250e-03 : f32
      %31 = vector.broadcast %cst_19 : f32 to vector<1x1xf32>
      %32 = arith.mulf %30, %31 : vector<1x1xf32>
      %c0_20 = arith.constant 0 : index
      %c0_21 = arith.constant 0 : index
      %33 = vector.load %arg4[%c0_20, %c0_21] : memref<1x1xf32, #tpu.memory_space<vmem>>, vector<1x1xf32>
      tpu.vector_store %arg4[%c0_20, %c0_21], %32 {strides = array<i32>} : memref<1x1xf32, #tpu.memory_space<vmem>>, vector<1x1xf32>,
    } else {
    }
    return
  }
  func.func @transform_0(%arg0: i32, %arg1: memref<256xi32, #tpu.memory_space<smem>>) -> (i32, i32) {
    %c0_i32 = arith.constant 0 : i32
    %c0_i32_0 = arith.constant 0 : i32
    return %arg0, %c0_i32 : i32, i32
  }
  func.func @transform_1(%arg0: i32, %arg1: memref<256xi32, #tpu.memory_space<smem>>) -> (i32, i32) {
    %c0_i32 = arith.constant 0 : i32
    %c0_i32_0 = arith.constant 0 : i32
    %c0_i32_1 = arith.constant 0 : i32
    return %c0_i32, %c0_i32_0 : i32, i32
  }
  func.func @transform_2(%arg0: i32, %arg1: memref<256xi32, #tpu.memory_space<smem>>) -> (i32, i32) {
    %c0_i32 = arith.constant 0 : i32
    %c0_i32_0 = arith.constant 0 : i32
    %c0_i32_1 = arith.constant 0 : i32
    return %c0_i32, %c0_i32_0 : i32, i32
  }
}

</mosaic_0001>

<llo_original>
// kernel: tpu_custom_call.1
$region0: #{tpu_custom_call.1}
  #allocation0 [shape = 'u32[]', space=smem, size = 0x4, offset = 0x4, fixed_abs, tag = 'smem constant byte address 0x4 - core index']
  #allocation1 [shape = 'u32[144,128]{1,0:T(1,128)}', space=vmem, size = 0x12000, scoped, tag = 'internal scratch']
  #allocation2 [shape = 'f32[128,512]{1,0:T(8,128)}', space=vmem, size = 0x40000, scoped, tag = 'scratch operand']
  #allocation3 [shape = 's32[1]{0}', space=sflag, size = 0x4, scoped, tag = 'scoped memory for tpu_custom_call.1']
  #allocation4 [shape = 'u8[1024]{0}', space=smem, size = 0x400, scoped, tag = 'prefetched SMEM operand 0']
  %s0 = inlined_call_operand.hbm [shape: s32[256], index: 0, kind: input, shape index: {}]
  %s1 = inlined_call_operand.hbm [shape: f32[256,512], index: 1, kind: input, shape index: {}]
  %s2 = inlined_call_operand.hbm [shape: f32[10,512], index: 2, kind: input, shape index: {}]
  %s3 = inlined_call_operand.hbm [shape: f32[1,1], index: 3, kind: output, shape index: {}]
  %s4 = sld [smem:[#allocation0]]
  $region64: #{tpu_custom_call.1} parent=0
    _
  %s6 = ssub.s32 1, %s4
  %s7 = scalar_select 0, %s6, %s4
  %9 = dma.hbm_to_smem %s0, 32, [#allocation4], [#allocation3]
  %10 = dma.done [#allocation3], 32
  %11 = sfence
  $region1: #{tpu_custom_call.1} parent=0
    #allocation5 [shape = 'u8[524288]{0}', space=vmem, size = 0x80000, scoped, tag = 'input window, operand 1']
    #allocation6 [shape = 's32[2]{0}', space=sflag, size = 0x8, scoped, tag = 'scoped memory for tpu_custom_call.1']
    #allocation7 [shape = 's32[2]{0}', space=sflag, size = 0x8, scoped, tag = 'scoped memory for tpu_custom_call.1']
    #allocation8 [shape = 'u8[32768]{0}', space=vmem, size = 0x8000, scoped, tag = 'input window, operand 2, single buffered']
    #allocation9 [shape = 's32[1]{0}', space=sflag, size = 0x4, scoped, tag = 'scoped memory for tpu_custom_call.1']
    #allocation10 [shape = 'u8[512]{0}', space=vmem, size = 0x400, scoped, tag = 'output window, operand 0, single buffered']
    %12 = vsyncpa [#allocation6], 0
    %s13 = scalar_lea.sflag [#allocation6], 1
    %14 = vsyncpa %s13, 0
    %15 = vsyncpa [#allocation9], 0
    %16 = vsyncpa [#allocation7], 0
    loop: start=0, step=1, limit=4
    $region2: #{tpu_custom_call.1} parent=1 // loop_pre_header
      _
    $region3: #{tpu_custom_call.1} parent=1 // loop_header
      %s18 = sphi 0, %s22
      %p19 = scmp.ge.s32.totalorder %s18, 4
      %s28 = sphi 0, %s30
      %s31 = sphi 0, %s28
      %s32 = sphi 0, %s31
      %s48 = sphi 0, %s32
      %s52 = sphi 0, %s52
      %s54 = sphi 0, %s52
      %s55 = sphi 0, %s54
      %s69 = sphi 0, %s55
      %s73 = sphi 0, %s73
      %s75 = sphi 0, %s73
      %s76 = sphi 0, %s75
      %s90 = sphi 0, %s76
    $region4: #{tpu_custom_call.1} parent=1 // loop_header_branch
      %21 = sbr.rel (%p19) target = $region8
    $region5: #{tpu_custom_call.1} parent=1 // loop_body
      %s23 = ssub.s32 %s18, 1
      %s24 = ssub.s32 %s18, 2
      %s25 = sadd.s32 %s18, 1
      %s26 = ssub.s32 %s18, %s25
      %p27 = scmp.eq.s32.totalorder %s26, 0
      %s29 = sadd.s32 %s28, 1
      %s30 = scalar_select %p27, %s28, %s29
      %p33 = pneg %p27
      %p34 = scmp.eq.s32.totalorder %s18, 1
      %p35 = por %p33, %p34
      %p36 = scmp.ne.s32.totalorder %s28, %s31
      %p37 = scmp.eq.s32.totalorder %s18, 0
      %p38 = por %p36, %p37
      %p39 = scmp.ne.s32.totalorder %s28, %s31
      %p40 = scmp.eq.s32.totalorder %s23, 1
      %p41 = por %p39, %p40
      %p42 = scmp.ne.s32.totalorder %s31, %s32
      %p43 = scmp.eq.s32.totalorder %s23, 0
      %p44 = por %p42, %p43
      %p45 = scmp.ne.s32.totalorder %s31, %s32
      %p46 = scmp.eq.s32.totalorder %s24, 1
      %p47 = por %p45, %p46
      %p49 = scmp.ne.s32.totalorder %s32, %s48
      %p50 = scmp.eq.s32.totalorder %s24, 0
      %p51 = por %p49, %p50
      %s53 = sadd.s32 %s52, 1
      %p56 = scmp.eq.s32.totalorder %s18, 1
      %p57 = scmp.ne.s32.totalorder %s52, %s54
      %p58 = scmp.eq.s32.totalorder %s18, 0
      %p59 = por %p57, %p58
      %p60 = scmp.ne.s32.totalorder %s52, %s54
      %p61 = scmp.eq.s32.totalorder %s23, 1
      %p62 = por %p60, %p61
      %p63 = scmp.ne.s32.totalorder %s54, %s55
      %p64 = scmp.eq.s32.totalorder %s23, 0
      %p65 = por %p63, %p64
      %p66 = scmp.ne.s32.totalorder %s54, %s55
      %p67 = scmp.eq.s32.totalorder %s24, 1
      %p68 = por %p66, %p67
      %p70 = scmp.ne.s32.totalorder %s55, %s69
      %p71 = scmp.eq.s32.totalorder %s24, 0
      %p72 = por %p70, %p71
      %s74 = sadd.s32 %s73, 1
      %p77 = scmp.eq.s32.totalorder %s18, 1
      %p78 = scmp.ne.s32.totalorder %s73, %s75
      %p79 = scmp.eq.s32.totalorder %s18, 0
      %p80 = por %p78, %p79
      %p81 = scmp.ne.s32.totalorder %s73, %s75
      %p82 = scmp.eq.s32.totalorder %s23, 1
      %p83 = por %p81, %p82
      %p84 = scmp.ne.s32.totalorder %s75, %s76
      %p85 = scmp.eq.s32.totalorder %s23, 0
      %p86 = por %p84, %p85
      %p87 = scmp.ne.s32.totalorder %s75, %s76
      %p88 = scmp.eq.s32.totalorder %s24, 1
      %p89 = por %p87, %p88
      %p91 = scmp.ne.s32.totalorder %s76, %s90
      %p92 = scmp.eq.s32.totalorder %s24, 0
      %p93 = por %p91, %p92
      %p94 = scmp.le.s32.totalorder 1, %s18
      %p95 = scmp.lt.s32.totalorder %s18, 3
      %p96 = pnand %p94, %p95
      %p97 = pneg %p96
      // Predicated region
      $region9: #{tpu_custom_call.1} parent=5 // pred_check
        _
      $region10: #{tpu_custom_call.1} parent=5 // pred_check_branch
        %99 = sbr.rel (%p96) target = $region12
      $region11: #{tpu_custom_call.1} parent=5 // pred_region
        %s100 = ssub.s32 %s18, 1
        // Predicated region
        $region13: #{tpu_custom_call.1} parent=11 // pred_check
          %p101 = pneg %p65
        $region14: #{tpu_custom_call.1} parent=11 // pred_check_branch
          %103 = sbr.rel (%p101) target = $region16
        $region15: #{tpu_custom_call.1} parent=11 // pred_region
          %s105 = ssub.s32 1024, 1024
          %106 = vsyncadd [#allocation9], %s105
          %s107 = sshll.u32 [#allocation8], 4
          %s108 = int_to_ptr.vmem [resolvable:$true] %s107
          %113 = dma.hbm_to_vmem [thread:$0]  %s2, 1024, %s108, [#allocation9], 512, 512, 32
        $region16: #{tpu_custom_call.1} parent=11 // pred_fallthru
          _
      $region12: #{tpu_custom_call.1} parent=5 // pred_fallthru
        _
      %p114 = scmp.lt.s32.totalorder %s18, 2
      // Predicated region
      $region17: #{tpu_custom_call.1} parent=5 // pred_check
        %p115 = pneg %p114
      $region18: #{tpu_custom_call.1} parent=5 // pred_check_branch
        %117 = sbr.rel (%p115) target = $region20
      $region19: #{tpu_custom_call.1} parent=5 // pred_region
        // Predicated region
        $region21: #{tpu_custom_call.1} parent=19 // pred_check
          %p118 = pneg %p38
        $region22: #{tpu_custom_call.1} parent=19 // pred_check_branch
          %120 = sbr.rel (%p118) target = $region24
        $region23: #{tpu_custom_call.1} parent=19 // pred_region
          %s121 = sand.u32 %s28, 1
          %s122 = scalar_lea.sflag [#allocation6], %s121
          %s123 = sand.u32 %s28, 1
          %s124 = smul.addr %s123, 512
          %s125 = scalar_lea.vmem [#allocation5], %s124
          %s126 = smul.u32 16, %s18
          %s128 = ssub.s32 8192, 8192
          %129 = vsyncadd %s122, %s128
          %s130 = smul.addr %s126, 4
          %s131 = smul.addr %s130, 128
          %s132 = scalar_lea.hbm %s1, %s131
          %s133 = sshll.u32 %s125, 4
          %s134 = int_to_ptr.vmem [resolvable:$true] %s133
          %139 = dma.hbm_to_vmem [thread:$0]  %s132, 8192, %s134, %s122, 512, 512, 32
        $region24: #{tpu_custom_call.1} parent=19 // pred_fallthru
          _
      $region20: #{tpu_custom_call.1} parent=5 // pred_fallthru
        _
      %p140 = scmp.le.s32.totalorder 1, %s18
      %p141 = scmp.lt.s32.totalorder %s18, 3
      %p142 = pnand %p140, %p141
      %p143 = pneg %p142
      // Predicated region
      $region25: #{tpu_custom_call.1} parent=5 // pred_check
        _
      $region26: #{tpu_custom_call.1} parent=5 // pred_check_branch
        %145 = sbr.rel (%p142) target = $region28
      $region27: #{tpu_custom_call.1} parent=5 // pred_region
        %s146 = ssub.s32 %s18, 1
        %s147 = sand.u32 %s31, 1
        %s148 = scalar_lea.sflag [#allocation6], %s147
        %s149 = sand.u32 %s31, 1
        %s150 = smul.addr %s149, 512
        %s151 = scalar_lea.vmem [#allocation5], %s150
        // Predicated region
        $region29: #{tpu_custom_call.1} parent=27 // pred_check
          %p152 = pneg %p44
        $region30: #{tpu_custom_call.1} parent=27 // pred_check_branch
          %154 = sbr.rel (%p152) target = $region32
        $region31: #{tpu_custom_call.1} parent=27 // pred_region
          %155 = dma.done %s148, 8192
        $region32: #{tpu_custom_call.1} parent=27 // pred_fallthru
          _
        // Predicated region
        $region33: #{tpu_custom_call.1} parent=27 // pred_check
          %p156 = pneg %p65
        $region34: #{tpu_custom_call.1} parent=27 // pred_check_branch
          %158 = sbr.rel (%p156) target = $region36
        $region35: #{tpu_custom_call.1} parent=27 // pred_region
          %159 = dma.done [#allocation9], 1024
        $region36: #{tpu_custom_call.1} parent=27 // pred_fallthru
          _
        %s160 = sand.u32 %s31, 1
        %s161 = scalar_lea.sflag [#allocation6], %s160
        %s162 = sand.u32 %s31, 1
        %s163 = smul.addr %s162, 512
        %s164 = scalar_lea.vmem [#allocation5], %s163
        %p165 = pneg %p44
        %p166 = pneg %p41
        %p167 = pneg %p65
        %p168 = pneg %p62
        %p169 = pneg %p86
        %p170 = pneg %p83
        %s171 = smul.u32 16, %s23
        %s172 = smul.u32 %s23, 128
        %p173 = scmp.eq.s32.totalorder %s23, 0
        // Predicated region
        $region37: #{tpu_custom_call.1} parent=27 // pred_check
          %p174 = pneg %p173
        $region38: #{tpu_custom_call.1} parent=27 // pred_check_branch
          %176 = sbr.rel (%p174) target = $region40
        $region39: #{tpu_custom_call.1} parent=27 // pred_region
          %vm177 = vcmask 0
          %178 = vst.msk [vmem:[#allocation10] sm:$0x1] %vm177, 0.0
        $region40: #{tpu_custom_call.1} parent=27 // pred_fallthru
          _
        loop: start=0, step=1, limit=128
        $region41: #{tpu_custom_call.1} parent=27 // loop_pre_header
          _
        $region42: #{tpu_custom_call.1} parent=27 // loop_header
          %s180 = sphi 0, %s184
          %p181 = scmp.ge.s32.totalorder %s180, 128
        $region43: #{tpu_custom_call.1} parent=27 // loop_header_branch
          %183 = sbr.rel (%p181) target = $region47
        $region44: #{tpu_custom_call.1} parent=27 // loop_body
          %s185 = sadd.s32 %s172, %s180
          %s186 = sld [smem:[#allocation4 + %s185]]
          %p187 = scmp.gt.s32.totalorder %s186, 0
          %s188 = scalar_select %p187, %s186, 0
          %p189 = scmp.lt.s32.totalorder %s188, 9
          %s190 = scalar_select %p189, %s188, 9
          %s191 = sshra.s32 %s190, 3
          %s192 = sand.u32 %s190, 7
          %s193 = sshra.s32 %s190, 3
          %s194 = sand.u32 %s190, 7
          %s195 = smul.u32 %s191, 4
          %s196 = smul.u32 %s195, 8
          %s197 = sadd.s32 %s196, %s194
          %s198 = scalar_lea.vmem [#allocation8], %s197
          %v199 = vld [vmem:[%s198] ss:$8 sm:$0xf]
          %v200 = vlaneseq
          %vm201 = vcmp.ge.s32.totalorder %v200, 0
          %vm202 = vcmp.lt.s32.totalorder %v200, 512
          %vm203 = vmand %vm201, %vm202
          %s204 = sshra.s32 %s180, 3
          %s205 = sand.u32 %s180, 7
          %s206 = sshra.s32 %s180, 3
          %s207 = sand.u32 %s180, 7
          %s208 = smul.u32 %s204, 4
          %s209 = smul.u32 %s208, 8
          %s210 = sadd.s32 %s209, %s207
          %s211 = scalar_lea.vmem [#allocation2], %s210
          %212 = vst.msk [vmem:[%s211] ss:$8 sm:$0xf] %vm203, %v199
          %213 = vst.msk [vmem:[%s211] ss:$8 sm:$0x0] %vm203, %v199
        $region45: #{tpu_custom_call.1} parent=27 // loop_footer
          %s184 = sadd.s32 1, %s180
        $region46: #{tpu_custom_call.1} parent=27 // loop_footer_branch
          %179 = sbr.rel target = $region42
        $region47: #{tpu_custom_call.1} parent=27 // loop_exit
          _
        %v214 = vld [vmem:[%s151] sm:$0xff]
        %v215 = vld [vmem:[%s151 + $0x8] sm:$0xff]
        %v216 = vld [vmem:[%s151 + $0x10] sm:$0xff]
        %v217 = vld [vmem:[%s151 + $0x18] sm:$0xff]
        %v218 = vld [vmem:[%s151 + $0x20] sm:$0xff]
        %v219 = vld [vmem:[%s151 + $0x28] sm:$0xff]
        %v220 = vld [vmem:[%s151 + $0x30] sm:$0xff]
        %v221 = vld [vmem:[%s151 + $0x38] sm:$0xff]
        %v222 = vld [vmem:[%s151 + $0x40] sm:$0xff]
        %v223 = vld [vmem:[%s151 + $0x48] sm:$0xff]
        %v224 = vld [vmem:[%s151 + $0x50] sm:$0xff]
        %v225 = vld [vmem:[%s151 + $0x58] sm:$0xff]
        %v226 = vld [vmem:[%s151 + $0x60] sm:$0xff]
        %v227 = vld [vmem:[%s151 + $0x68] sm:$0xff]
        %v228 = vld [vmem:[%s151 + $0x70] sm:$0xff]
        %v229 = vld [vmem:[%s151 + $0x78] sm:$0xff]
        %v230 = vld [vmem:[%s151 + $0x80] sm:$0xff]
        %v231 = vld [vmem:[%s151 + $0x88] sm:$0xff]
        %v232 = vld [vmem:[%s151 + $0x90] sm:$0xff]
        %v233 = vld [vmem:[%s151 + $0x98] sm:$0xff]
        %v234 = vld [vmem:[%s151 + $0xa0] sm:$0xff]
        %v235 = vld [vmem:[%s151 + $0xa8] sm:$0xff]
        %v236 = vld [vmem:[%s151 + $0xb0] sm:$0xff]
        %v237 = vld [vmem:[%s151 + $0xb8] sm:$0xff]
        %v238 = vld [vmem:[%s151 + $0xc0] sm:$0xff]
        %v239 = vld [vmem:[%s151 + $0xc8] sm:$0xff]
        %v240 = vld [vmem:[%s151 + $0xd0] sm:$0xff]
        %v241 = vld [vmem:[%s151 + $0xd8] sm:$0xff]
        %v242 = vld [vmem:[%s151 + $0xe0] sm:$0xff]
        %v243 = vld [vmem:[%s151 + $0xe8] sm:$0xff]
        %v244 = vld [vmem:[%s151 + $0xf0] sm:$0xff]
        %v245 = vld [vmem:[%s151 + $0xf8] sm:$0xff]
        %v246 = vld [vmem:[%s151 + $0x100] sm:$0xff]
        %v247 = vld [vmem:[%s151 + $0x108] sm:$0xff]
        %v248 = vld [vmem:[%s151 + $0x110] sm:$0xff]
        %v249 = vld [vmem:[%s151 + $0x118] sm:$0xff]
        %v250 = vld [vmem:[%s151 + $0x120] sm:$0xff]
        %v251 = vld [vmem:[%s151 + $0x128] sm:$0xff]
        %v252 = vld [vmem:[%s151 + $0x130] sm:$0xff]
        %v253 = vld [vmem:[%s151 + $0x138] sm:$0xff]
        %v254 = vld [vmem:[%s151 + $0x140] sm:$0xff]
        %v255 = vld [vmem:[%s151 + $0x148] sm:$0xff]
        %v256 = vld [vmem:[%s151 + $0x150] sm:$0xff]
        %v257 = vld [vmem:[%s151 + $0x158] sm:$0xff]
        %v258 = vld [vmem:[%s151 + $0x160] sm:$0xff]
        %v259 = vld [vmem:[%s151 + $0x168] sm:$0xff]
        %v260 = vld [vmem:[%s151 + $0x170] sm:$0xff]
        %v261 = vld [vmem:[%s151 + $0x178] sm:$0xff]
        %v262 = vld [vmem:[%s151 + $0x180] sm:$0xff]
        %v263 = vld [vmem:[%s151 + $0x188] sm:$0xff]
        %v264 = vld [vmem:[%s151 + $0x190] sm:$0xff]
        %v265 = vld [vmem:[%s151 + $0x198] sm:$0xff]
        %v266 = vld [vmem:[%s151 + $0x1a0] sm:$0xff]
        %v267 = vld [vmem:[%s151 + $0x1a8] sm:$0xff]
        %v268 = vld [vmem:[%s151 + $0x1b0] sm:$0xff]
        %v269 = vld [vmem:[%s151 + $0x1b8] sm:$0xff]
        %v270 = vld [vmem:[%s151 + $0x1c0] sm:$0xff]
        %v271 = vld [vmem:[%s151 + $0x1c8] sm:$0xff]
        %v272 = vld [vmem:[%s151 + $0x1d0] sm:$0xff]
        %v273 = vld [vmem:[%s151 + $0x1d8] sm:$0xff]
        %v274 = vld [vmem:[%s151 + $0x1e0] sm:$0xff]
        %v275 = vld [vmem:[%s151 + $0x1e8] sm:$0xff]
        %v276 = vld [vmem:[%s151 + $0x1f0] sm:$0xff]
        %v277 = vld [vmem:[%s151 + $0x1f8] sm:$0xff]
        %v278 = vld [vmem:[#allocation2] sm:$0xff]
        %v279 = vld [vmem:[#allocation2 + $0x8] sm:$0xff]
        %v280 = vld [vmem:[#allocation2 + $0x10] sm:$0xff]
        %v281 = vld [vmem:[#allocation2 + $0x18] sm:$0xff]
        %v282 = vld [vmem:[#allocation2 + $0x20] sm:$0xff]
        %v283 = vld [vmem:[#allocation2 + $0x28] sm:$0xff]
        %v284 = vld [vmem:[#allocation2 + $0x30] sm:$0xff]
        %v285 = vld [vmem:[#allocation2 + $0x38] sm:$0xff]
        %v286 = vld [vmem:[#allocation2 + $0x40] sm:$0xff]
        %v287 = vld [vmem:[#allocation2 + $0x48] sm:$0xff]
        %v288 = vld [vmem:[#allocation2 + $0x50] sm:$0xff]
        %v289 = vld [vmem:[#allocation2 + $0x58] sm:$0xff]
        %v290 = vld [vmem:[#allocation2 + $0x60] sm:$0xff]
        %v291 = vld [vmem:[#allocation2 + $0x68] sm:$0xff]
        %v292 = vld [vmem:[#allocation2 + $0x70] sm:$0xff]
        %v293 = vld [vmem:[#allocation2 + $0x78] sm:$0xff]
        %v294 = vld [vmem:[#allocation2 + $0x80] sm:$0xff]
        %v295 = vld [vmem:[#allocation2 + $0x88] sm:$0xff]
        %v296 = vld [vmem:[#allocation2 + $0x90] sm:$0xff]
        %v297 = vld [vmem:[#allocation2 + $0x98] sm:$0xff]
        %v298 = vld [vmem:[#allocation2 + $0xa0] sm:$0xff]
        %v299 = vld [vmem:[#allocation2 + $0xa8] sm:$0xff]
        %v300 = vld [vmem:[#allocation2 + $0xb0] sm:$0xff]
        %v301 = vld [vmem:[#allocation2 + $0xb8] sm:$0xff]
        %v302 = vld [vmem:[#allocation2 + $0xc0] sm:$0xff]
        %v303 = vld [vmem:[#allocation2 + $0xc8] sm:$0xff]
        %v304 = vld [vmem:[#allocation2 + $0xd0] sm:$0xff]
        %v305 = vld [vmem:[#allocation2 + $0xd8] sm:$0xff]
        %v306 = vld [vmem:[#allocation2 + $0xe0] sm:$0xff]
        %v307 = vld [vmem:[#allocation2 + $0xe8] sm:$0xff]
        %v308 = vld [vmem:[#allocation2 + $0xf0] sm:$0xff]
        %v309 = vld [vmem:[#allocation2 + $0xf8] sm:$0xff]
        %v310 = vld [vmem:[#allocation2 + $0x100] sm:$0xff]
        %v311 = vld [vmem:[#allocation2 + $0x108] sm:$0xff]
        %v312 = vld [vmem:[#allocation2 + $0x110] sm:$0xff]
        %v313 = vld [vmem:[#allocation2 + $0x118] sm:$0xff]
        %v314 = vld [vmem:[#allocation2 + $0x120] sm:$0xff]
        %v315 = vld [vmem:[#allocation2 + $0x128] sm:$0xff]
        %v316 = vld [vmem:[#allocation2 + $0x130] sm:$0xff]
        %v317 = vld [vmem:[#allocation2 + $0x138] sm:$0xff]
        %v318 = vld [vmem:[#allocation2 + $0x140] sm:$0xff]
        %v319 = vld [vmem:[#allocation2 + $0x148] sm:$0xff]
        %v320 = vld [vmem:[#allocation2 + $0x150] sm:$0xff]
        %v321 = vld [vmem:[#allocation2 + $0x158] sm:$0xff]
        %v322 = vld [vmem:[#allocation2 + $0x160] sm:$0xff]
        %v323 = vld [vmem:[#allocation2 + $0x168] sm:$0xff]
        %v324 = vld [vmem:[#allocation2 + $0x170] sm:$0xff]
        %v325 = vld [vmem:[#allocation2 + $0x178] sm:$0xff]
        %v326 = vld [vmem:[#allocation2 + $0x180] sm:$0xff]
        %v327 = vld [vmem:[#allocation2 + $0x188] sm:$0xff]
        %v328 = vld [vmem:[#allocation2 + $0x190] sm:$0xff]
        %v329 = vld [vmem:[#allocation2 + $0x198] sm:$0xff]
        %v330 = vld [vmem:[#allocation2 + $0x1a0] sm:$0xff]
        %v331 = vld [vmem:[#allocation2 + $0x1a8] sm:$0xff]
        %v332 = vld [vmem:[#allocation2 + $0x1b0] sm:$0xff]
        %v333 = vld [vmem:[#allocation2 + $0x1b8] sm:$0xff]
        %v334 = vld [vmem:[#allocation2 + $0x1c0] sm:$0xff]
        %v335 = vld [vmem:[#allocation2 + $0x1c8] sm:$0xff]
        %v336 = vld [vmem:[#allocation2 + $0x1d0] sm:$0xff]
        %v337 = vld [vmem:[#allocation2 + $0x1d8] sm:$0xff]
        %v338 = vld [vmem:[#allocation2 + $0x1e0] sm:$0xff]
        %v339 = vld [vmem:[#allocation2 + $0x1e8] sm:$0xff]
        %v340 = vld [vmem:[#allocation2 + $0x1f0] sm:$0xff]
        %v341 = vld [vmem:[#allocation2 + $0x1f8] sm:$0xff]
        %v342 = vsub.f32 %v214, %v278
        %v343 = vsub.f32 %v215, %v279
        %v344 = vsub.f32 %v216, %v280
        %v345 = vsub.f32 %v217, %v281
        %v346 = vsub.f32 %v218, %v282
        %v347 = vsub.f32 %v219, %v283
        %v348 = vsub.f32 %v220, %v284
        %v349 = vsub.f32 %v221, %v285
        %v350 = vsub.f32 %v222, %v286
        %v351 = vsub.f32 %v223, %v287
        %v352 = vsub.f32 %v224, %v288
        %v353 = vsub.f32 %v225, %v289
        %v354 = vsub.f32 %v226, %v290
        %v355 = vsub.f32 %v227, %v291
        %v356 = vsub.f32 %v228, %v292
        %v357 = vsub.f32 %v229, %v293
        %v358 = vsub.f32 %v230, %v294
        %v359 = vsub.f32 %v231, %v295
        %v360 = vsub.f32 %v232, %v296
        %v361 = vsub.f32 %v233, %v297
        %v362 = vsub.f32 %v234, %v298
        %v363 = vsub.f32 %v235, %v299
        %v364 = vsub.f32 %v236, %v300
        %v365 = vsub.f32 %v237, %v301
        %v366 = vsub.f32 %v238, %v302
        %v367 = vsub.f32 %v239, %v303
        %v368 = vsub.f32 %v240, %v304
        %v369 = vsub.f32 %v241, %v305
        %v370 = vsub.f32 %v242, %v306
        %v371 = vsub.f32 %v243, %v307
        %v372 = vsub.f32 %v244, %v308
        %v373 = vsub.f32 %v245, %v309
        %v374 = vsub.f32 %v246, %v310
        %v375 = vsub.f32 %v247, %v311
        %v376 = vsub.f32 %v248, %v312
        %v377 = vsub.f32 %v249, %v313
        %v378 = vsub.f32 %v250, %v314
        %v379 = vsub.f32 %v251, %v315
        %v380 = vsub.f32 %v252, %v316
        %v381 = vsub.f32 %v253, %v317
        %v382 = vsub.f32 %v254, %v318
        %v383 = vsub.f32 %v255, %v319
        %v384 = vsub.f32 %v256, %v320
        %v385 = vsub.f32 %v257, %v321
        %v386 = vsub.f32 %v258, %v322
        %v387 = vsub.f32 %v259, %v323
        %v388 = vsub.f32 %v260, %v324
        %v389 = vsub.f32 %v261, %v325
        %v390 = vsub.f32 %v262, %v326
        %v391 = vsub.f32 %v263, %v327
        %v392 = vsub.f32 %v264, %v328
        %v393 = vsub.f32 %v265, %v329
        %v394 = vsub.f32 %v266, %v330
        %v395 = vsub.f32 %v267, %v331
        %v396 = vsub.f32 %v268, %v332
        %v397 = vsub.f32 %v269, %v333
        %v398 = vsub.f32 %v270, %v334
        %v399 = vsub.f32 %v271, %v335
        %v400 = vsub.f32 %v272, %v336
        %v401 = vsub.f32 %v273, %v337
        %v402 = vsub.f32 %v274, %v338
        %v403 = vsub.f32 %v275, %v339
        %v404 = vsub.f32 %v276, %v340
        %v405 = vsub.f32 %v277, %v341
        %v406 = vmul.f32 %v342, %v342
        %v407 = vmul.f32 %v343, %v343
        %v408 = vmul.f32 %v344, %v344
        %v409 = vmul.f32 %v345, %v345
        %v410 = vmul.f32 %v346, %v346
        %v411 = vmul.f32 %v347, %v347
        %v412 = vmul.f32 %v348, %v348
        %v413 = vmul.f32 %v349, %v349
        %v414 = vmul.f32 %v350, %v350
        %v415 = vmul.f32 %v351, %v351
        %v416 = vmul.f32 %v352, %v352
        %v417 = vmul.f32 %v353, %v353
        %v418 = vmul.f32 %v354, %v354
        %v419 = vmul.f32 %v355, %v355
        %v420 = vmul.f32 %v356, %v356
        %v421 = vmul.f32 %v357, %v357
        %v422 = vmul.f32 %v358, %v358
        %v423 = vmul.f32 %v359, %v359
        %v424 = vmul.f32 %v360, %v360
        %v425 = vmul.f32 %v361, %v361
        %v426 = vmul.f32 %v362, %v362
        %v427 = vmul.f32 %v363, %v363
        %v428 = vmul.f32 %v364, %v364
        %v429 = vmul.f32 %v365, %v365
        %v430 = vmul.f32 %v366, %v366
        %v431 = vmul.f32 %v367, %v367
        %v432 = vmul.f32 %v368, %v368
        %v433 = vmul.f32 %v369, %v369
        %v434 = vmul.f32 %v370, %v370
        %v435 = vmul.f32 %v371, %v371
        %v436 = vmul.f32 %v372, %v372
        %v437 = vmul.f32 %v373, %v373
        %v438 = vmul.f32 %v374, %v374
        %v439 = vmul.f32 %v375, %v375
        %v440 = vmul.f32 %v376, %v376
        %v441 = vmul.f32 %v377, %v377
        %v442 = vmul.f32 %v378, %v378
        %v443 = vmul.f32 %v379, %v379
        %v444 = vmul.f32 %v380, %v380
        %v445 = vmul.f32 %v381, %v381
        %v446 = vmul.f32 %v382, %v382
        %v447 = vmul.f32 %v383, %v383
        %v448 = vmul.f32 %v384, %v384
        %v449 = vmul.f32 %v385, %v385
        %v450 = vmul.f32 %v386, %v386
        %v451 = vmul.f32 %v387, %v387
        %v452 = vmul.f32 %v388, %v388
        %v453 = vmul.f32 %v389, %v389
        %v454 = vmul.f32 %v390, %v390
        %v455 = vmul.f32 %v391, %v391
        %v456 = vmul.f32 %v392, %v392
        %v457 = vmul.f32 %v393, %v393
        %v458 = vmul.f32 %v394, %v394
        %v459 = vmul.f32 %v395, %v395
        %v460 = vmul.f32 %v396, %v396
        %v461 = vmul.f32 %v397, %v397
        %v462 = vmul.f32 %v398, %v398
        %v463 = vmul.f32 %v399, %v399
        %v464 = vmul.f32 %v400, %v400
        %v465 = vmul.f32 %v401, %v401
        %v466 = vmul.f32 %v402, %v402
        %v467 = vmul.f32 %v403, %v403
        %v468 = vmul.f32 %v404, %v404
        %v469 = vmul.f32 %v405, %v405
        %v470 = vadd.f32 %v406, %v407
        %v471 = vadd.f32 %v470, %v408
        %v472 = vadd.f32 %v471, %v409
        %473 = vadd.xlane.f32.xlu0 %v472
        %v474 = vpop.xlane.xlu0 %473
        %v475 = vadd.f32 %v410, %v411
        %v476 = vadd.f32 %v475, %v412
        %v477 = vadd.f32 %v476, %v413
        %478 = vadd.xlane.f32.xlu0 %v477
        %v479 = vpop.xlane.xlu0 %478
        %v480 = vadd.f32 %v414, %v415
        %v481 = vadd.f32 %v480, %v416
        %v482 = vadd.f32 %v481, %v417
        %483 = vadd.xlane.f32.xlu0 %v482
        %v484 = vpop.xlane.xlu0 %483
        %v485 = vadd.f32 %v418, %v419
        %v486 = vadd.f32 %v485, %v420
        %v487 = vadd.f32 %v486, %v421
        %488 = vadd.xlane.f32.xlu0 %v487
        %v489 = vpop.xlane.xlu0 %488
        %v490 = vadd.f32 %v422, %v423
        %v491 = vadd.f32 %v490, %v424
        %v492 = vadd.f32 %v491, %v425
        %493 = vadd.xlane.f32.xlu0 %v492
        %v494 = vpop.xlane.xlu0 %493
        %v495 = vadd.f32 %v426, %v427
        %v496 = vadd.f32 %v495, %v428
        %v497 = vadd.f32 %v496, %v429
        %498 = vadd.xlane.f32.xlu0 %v497
        %v499 = vpop.xlane.xlu0 %498
        %v500 = vadd.f32 %v430, %v431
        %v501 = vadd.f32 %v500, %v432
        %v502 = vadd.f32 %v501, %v433
        %503 = vadd.xlane.f32.xlu0 %v502
        %v504 = vpop.xlane.xlu0 %503
        %v505 = vadd.f32 %v434, %v435
        %v506 = vadd.f32 %v505, %v436
        %v507 = vadd.f32 %v506, %v437
        %508 = vadd.xlane.f32.xlu0 %v507
        %v509 = vpop.xlane.xlu0 %508
        %v510 = vadd.f32 %v438, %v439
        %v511 = vadd.f32 %v510, %v440
        %v512 = vadd.f32 %v511, %v441
        %513 = vadd.xlane.f32.xlu0 %v512
        %v514 = vpop.xlane.xlu0 %513
        %v515 = vadd.f32 %v442, %v443
        %v516 = vadd.f32 %v515, %v444
        %v517 = vadd.f32 %v516, %v445
        %518 = vadd.xlane.f32.xlu0 %v517
        %v519 = vpop.xlane.xlu0 %518
        %v520 = vadd.f32 %v446, %v447
        %v521 = vadd.f32 %v520, %v448
        %v522 = vadd.f32 %v521, %v449
        %523 = vadd.xlane.f32.xlu0 %v522
        %v524 = vpop.xlane.xlu0 %523
        %v525 = vadd.f32 %v450, %v451
        %v526 = vadd.f32 %v525, %v452
        %v527 = vadd.f32 %v526, %v453
        %528 = vadd.xlane.f32.xlu0 %v527
        %v529 = vpop.xlane.xlu0 %528
        %v530 = vadd.f32 %v454, %v455
        %v531 = vadd.f32 %v530, %v456
        %v532 = vadd.f32 %v531, %v457
        %533 = vadd.xlane.f32.xlu0 %v532
        %v534 = vpop.xlane.xlu0 %533
        %v535 = vadd.f32 %v458, %v459
        %v536 = vadd.f32 %v535, %v460
        %v537 = vadd.f32 %v536, %v461
        %538 = vadd.xlane.f32.xlu0 %v537
        %v539 = vpop.xlane.xlu0 %538
        %v540 = vadd.f32 %v462, %v463
        %v541 = vadd.f32 %v540, %v464
        %v542 = vadd.f32 %v541, %v465
        %543 = vadd.xlane.f32.xlu0 %v542
        %v544 = vpop.xlane.xlu0 %543
        %v545 = vadd.f32 %v466, %v467
        %v546 = vadd.f32 %v545, %v468
        %v547 = vadd.f32 %v546, %v469
        %548 = vadd.xlane.f32.xlu0 %v547
        %v549 = vpop.xlane.xlu0 %548
        %v550 = vmax.f32 %v474, 1e-12
        %v551 = vmax.f32 %v479, 1e-12
        %v552 = vmax.f32 %v484, 1e-12
        %v553 = vmax.f32 %v489, 1e-12
        %v554 = vmax.f32 %v494, 1e-12
        %v555 = vmax.f32 %v499, 1e-12
        %v556 = vmax.f32 %v504, 1e-12
        %v557 = vmax.f32 %v509, 1e-12
        %v558 = vmax.f32 %v514, 1e-12
        %v559 = vmax.f32 %v519, 1e-12
        %v560 = vmax.f32 %v524, 1e-12
        %v561 = vmax.f32 %v529, 1e-12
        %v562 = vmax.f32 %v534, 1e-12
        %v563 = vmax.f32 %v539, 1e-12
        %v564 = vmax.f32 %v544, 1e-12
        %v565 = vmax.f32 %v549, 1e-12
        %v566 = vmin.f32 %v550, 1e+12
        %v567 = vmin.f32 %v551, 1e+12
        %v568 = vmin.f32 %v552, 1e+12
        %v569 = vmin.f32 %v553, 1e+12
        %v570 = vmin.f32 %v554, 1e+12
        %v571 = vmin.f32 %v555, 1e+12
        %v572 = vmin.f32 %v556, 1e+12
        %v573 = vmin.f32 %v557, 1e+12
        %v574 = vmin.f32 %v558, 1e+12
        %v575 = vmin.f32 %v559, 1e+12
        %v576 = vmin.f32 %v560, 1e+12
        %v577 = vmin.f32 %v561, 1e+12
        %v578 = vmin.f32 %v562, 1e+12
        %v579 = vmin.f32 %v563, 1e+12
        %v580 = vmin.f32 %v564, 1e+12
        %v581 = vmin.f32 %v565, 1e+12
        %v582 = vlaneseq
        %v583 = vshrl.u32 %v582, 7
        %v584 = vadd.s32 %v583, 8
        %v585 = vadd.s32 %v583, 16
        %v586 = vadd.s32 %v583, 24
        %v587 = vadd.s32 %v583, 32
        %v588 = vadd.s32 %v583, 40
        %v589 = vadd.s32 %v583, 48
        %v590 = vadd.s32 %v583, 56
        %v591 = vadd.s32 %v583, 64
        %v592 = vadd.s32 %v583, 72
        %v593 = vadd.s32 %v583, 80
        %v594 = vadd.s32 %v583, 88
        %v595 = vadd.s32 %v583, 96
        %v596 = vadd.s32 %v583, 104
        %v597 = vadd.s32 %v583, 112
        %v598 = vadd.s32 %v583, 120
        %v599 = vstv %s172
        %v600 = vadd.s32 %v599, %v583
        %v601 = vadd.s32 %v599, %v584
        %v602 = vadd.s32 %v599, %v585
        %v603 = vadd.s32 %v599, %v586
        %v604 = vadd.s32 %v599, %v587
        %v605 = vadd.s32 %v599, %v588
        %v606 = vadd.s32 %v599, %v589
        %v607 = vadd.s32 %v599, %v590
        %v608 = vadd.s32 %v599, %v591
        %v609 = vadd.s32 %v599, %v592
        %v610 = vadd.s32 %v599, %v593
        %v611 = vadd.s32 %v599, %v594
        %v612 = vadd.s32 %v599, %v595
        %v613 = vadd.s32 %v599, %v596
        %v614 = vadd.s32 %v599, %v597
        %v615 = vadd.s32 %v599, %v598
        %vm616 = vcmp.lt.s32.totalorder %v600, 256
        %vm617 = vcmp.lt.s32.totalorder %v601, 256
        %vm618 = vcmp.lt.s32.totalorder %v602, 256
        %vm619 = vcmp.lt.s32.totalorder %v603, 256
        %vm620 = vcmp.lt.s32.totalorder %v604, 256
        %vm621 = vcmp.lt.s32.totalorder %v605, 256
        %vm622 = vcmp.lt.s32.totalorder %v606, 256
        %vm623 = vcmp.lt.s32.totalorder %v607, 256
        %vm624 = vcmp.lt.s32.totalorder %v608, 256
        %vm625 = vcmp.lt.s32.totalorder %v609, 256
        %vm626 = vcmp.lt.s32.totalorder %v610, 256
        %vm627 = vcmp.lt.s32.totalorder %v611, 256
        %vm628 = vcmp.lt.s32.totalorder %v612, 256
        %vm629 = vcmp.lt.s32.totalorder %v613, 256
        %vm630 = vcmp.lt.s32.totalorder %v614, 256
        %vm631 = vcmp.lt.s32.totalorder %v615, 256
        %v632 = vsel %vm616, %v566, 0.0
        %v633 = vsel %vm617, %v567, 0.0
        %v634 = vsel %vm618, %v568, 0.0
        %v635 = vsel %vm619, %v569, 0.0
        %v636 = vsel %vm620, %v570, 0.0
        %v637 = vsel %vm621, %v571, 0.0
        %v638 = vsel %vm622, %v572, 0.0
        %v639 = vsel %vm623, %v573, 0.0
        %v640 = vsel %vm624, %v574, 0.0
        %v641 = vsel %vm625, %v575, 0.0
        %v642 = vsel %vm626, %v576, 0.0
        %v643 = vsel %vm627, %v577, 0.0
        %v644 = vsel %vm628, %v578, 0.0
        %v645 = vsel %vm629, %v579, 0.0
        %v646 = vsel %vm630, %v580, 0.0
        %v647 = vsel %vm631, %v581, 0.0
        %v648 = vld [vmem:[#allocation10] sm:$0x1]
        %v649 = vadd.f32 %v632, %v633
        %v650 = vadd.f32 %v649, %v634
        %v651 = vadd.f32 %v650, %v635
        %v652 = vadd.f32 %v651, %v636
        %v653 = vadd.f32 %v652, %v637
        %v654 = vadd.f32 %v653, %v638
        %v655 = vadd.f32 %v654, %v639
        %v656 = vadd.f32 %v655, %v640
        %v657 = vadd.f32 %v656, %v641
        %v658 = vadd.f32 %v657, %v642
        %v659 = vadd.f32 %v658, %v643
        %v660 = vadd.f32 %v659, %v644
        %v661 = vadd.f32 %v660, %v645
        %v662 = vadd.f32 %v661, %v646
        %v663 = vadd.f32 %v662, %v647
        %v664 = vrot.slane %v663, 4
        %v665 = vadd.f32 %v663, %v664
        %v666 = vrot.slane %v665, 2
        %v667 = vadd.f32 %v665, %v666
        %v668 = vrot.slane %v667, 1
        %v669 = vadd.f32 %v667, %v668
        %v670 = vadd.f32 %v648, %v669
        %vm671 = vcmask 0
        %672 = vst.msk [vmem:[#allocation10] sm:$0x1] %vm671, %v670
        %p673 = scmp.eq.s32.totalorder %s23, 1
        // Predicated region
        $region48: #{tpu_custom_call.1} parent=27 // pred_check
          %p674 = pneg %p673
        $region49: #{tpu_custom_call.1} parent=27 // pred_check_branch
          %676 = sbr.rel (%p674) target = $region51
        $region50: #{tpu_custom_call.1} parent=27 // pred_region
          %v677 = vld [vmem:[#allocation10] sm:$0x1]
          %v678 = vmul.f32 %v677, 0.00390625
          %679 = vst.msk [vmem:[#allocation10] sm:$0x1] %vm671, %v678
        $region51: #{tpu_custom_call.1} parent=27 // pred_fallthru
          _
        // Predicated region
        $region52: #{tpu_custom_call.1} parent=27 // pred_check
          %p680 = pneg %p83
        $region53: #{tpu_custom_call.1} parent=27 // pred_check_branch
          %682 = sbr.rel (%p680) target = $region55
        $region54: #{tpu_custom_call.1} parent=27 // pred_region
          %s684 = ssub.s32 16, 16
          %685 = vsyncadd [#allocation7], %s684
          %s687 = sshll.u32 [#allocation10], 4
          %s688 = int_to_ptr.vmem [resolvable:$true] %s687
          %690 = dma.vmem_to_hbm [thread:$0]  %s688, 16, %s3, [#allocation7]
        $region55: #{tpu_custom_call.1} parent=27 // pred_fallthru
          _
        // Predicated region
        $region56: #{tpu_custom_call.1} parent=27 // pred_check
          %p691 = pneg %p83
        $region57: #{tpu_custom_call.1} parent=27 // pred_check_branch
          %693 = sbr.rel (%p691) target = $region59
        $region58: #{tpu_custom_call.1} parent=27 // pred_region
          %694 = dma.done [#allocation7], 16
        $region59: #{tpu_custom_call.1} parent=27 // pred_fallthru
          _
      $region28: #{tpu_custom_call.1} parent=5 // pred_fallthru
        _
      %p695 = scmp.le.s32.totalorder 2, %s18
      // Predicated region
      $region60: #{tpu_custom_call.1} parent=5 // pred_check
        %p696 = pneg %p695
      $region61: #{tpu_custom_call.1} parent=5 // pred_check_branch
        %698 = sbr.rel (%p696) target = $region63
      $region62: #{tpu_custom_call.1} parent=5 // pred_region
        %s699 = ssub.s32 %s18, 2
      $region63: #{tpu_custom_call.1} parent=5 // pred_fallthru
        _
    $region6: #{tpu_custom_call.1} parent=1 // loop_footer
      %s22 = sadd.s32 1, %s18
    $region7: #{tpu_custom_call.1} parent=1 // loop_footer_branch
      %17 = sbr.rel target = $region3
    $region8: #{tpu_custom_call.1} parent=1 // loop_exit
      _
    %700 = vsyncpa [#allocation6], 1
    %s701 = scalar_lea.sflag [#allocation6], 1
    %702 = vsyncpa %s701, 1
    %703 = vsyncpa [#allocation9], 1
    %704 = vsyncpa [#allocation7], 1
    %s705 = scalar_lea.sflag [#allocation7], 1
    %706 = vsyncpa %s705, 1

</llo_original>
